<compile_context>
chip_gen: v7x
topology: tpu7x:2x2x1
jax: 0.10.0
libtpu: 0.0.40
codegen_flags: <defaults>
</compile_context>

<pallas_src>
import jax
import jax.numpy as jnp
from jax.experimental import pallas as pl
from jax.experimental.pallas import tpu as pltpu


def _cdiv(a, b):
    return (a + b - 1) // b


def _round_up(x, m):
    return (x + m - 1) // m * m


def _projection_head_kernel(x_ref, w1_ref, b1_ref, w2_ref, b2_ref, o_ref):
    # In-kernel cast of x to the weight/MXU dtype (no-op on the pure f32 path).
    x = x_ref[...].astype(w1_ref.dtype)
    h = jnp.dot(x, w1_ref[...], preferred_element_type=jnp.float32)
    h = jnp.maximum(h + b1_ref[...], 0.0)                  # f32 bias + ReLU
    y = jnp.dot(h.astype(w2_ref.dtype), w2_ref[...],
                preferred_element_type=jnp.float32)
    y = jnp.maximum(y + b2_ref[...], 0.0)                  # f32 bias + ReLU
    # F.normalize(p=2, dim=-1): y / max(||y||, 1e-12)  ==  y * rsqrt(max(ss, 1e-24))
    ss = jnp.sum(y * y, axis=-1, keepdims=True)
    inv = jax.lax.rsqrt(jnp.maximum(ss, 1e-24))
    o_ref[...] = (y * inv).astype(o_ref.dtype)


def _pick_tile_b(B, d_in, hdim, d_out, x_itemsize, out_itemsize, vmem_budget, sub):
    """Largest tile_b (multiple of `sub`, capped at 1024) that fits a conservative
    VMEM budget, then capped so the grid keeps >= ~4 steps when B permits."""
    weights = (d_in * hdim + hdim * d_out) * 4 + (hdim + d_out) * 4   # f32 worst case
    per_row = (2 * d_in * x_itemsize          # x double-buffer (native dtype)
               + 2 * d_out * out_itemsize     # out double-buffer
               + hdim * 4                     # live h (f32)
               + 2 * d_out * 4)               # live y / y*y (f32)
    avail = max(vmem_budget - weights, per_row * sub)
    cap = max(sub, (avail // per_row) // sub * sub)
    tile = min(1024, cap, _round_up(B, sub))
    # Keep >= ~4 grid steps (pipelining; both v7x TCs busy) while keeping each
    # step >= 256 rows so the ~0.35 us/step overhead stays amortized.  For small
    # B this reduces to round_up(B, sub) (single step).
    tile = min(tile, max(256, _round_up(_cdiv(B, 4), 256)))
    return max(sub, tile // sub * sub)


def projection_head(x, w1, b1, w2, b2, *, tile_b=None, use_bf16=True, out_dtype=None):
    """x: (B, D_in); w1: (D_in, 256); b1: (256,); w2: (256, D_out); b2: (D_out,).

    use_bf16=True runs both MXU matmuls in bf16 with f32 accumulation (x is cast
    in-kernel).  use_bf16=False is the exact-f32 escape hatch.  out_dtype defaults
    to x.dtype; pass jnp.bfloat16 to halve output HBM traffic when the consumer
    tolerates it (unit-norm outputs compress well).
    """
    B, D_in = x.shape
    H = w1.shape[-1]
    D_out = w2.shape[-1]
    out_dtype = jnp.dtype(out_dtype if out_dtype is not None else x.dtype)

    # Weights/biases cast once here (small, resident in VMEM for every grid step).
    w_dtype = jnp.bfloat16 if use_bf16 else w1.dtype
    w1_k = w1.astype(w_dtype)
    w2_k = w2.astype(w_dtype)
    b1_2d = b1.reshape(1, H).astype(jnp.float32)
    b2_2d = b2.reshape(1, D_out).astype(jnp.float32)

    x_itemsize = jnp.dtype(x.dtype).itemsize
    out_itemsize = out_dtype.itemsize
    # bf16 native tiling is (16,128): snap sublanes to 16 whenever a bf16 stream
    # is involved, else 8 (f32).
    sub = 16 if (use_bf16 or out_dtype == jnp.bfloat16 or x.dtype == jnp.bfloat16) else 8

    # Conservative budget: safe on v7x (64 MiB physical / 32 MiB scoped default)
    # and leaves plenty of headroom on v5e/v6e.
    vmem_limit = 32 * 1024 * 1024
    if tile_b is None:
        tile_b = _pick_tile_b(B, D_in, H, D_out, x_itemsize, out_itemsize,
                              int(0.75 * vmem_limit), sub)
    assert tile_b % sub == 0, f"tile_b must be a multiple of {sub}"

    # Ragged batches: no jnp.pad — Pallas masks the partial last block's output
    # stores; all in-kernel ops are row-independent so garbage rows never escape.
    grid = (_cdiv(B, tile_b),)

    cost = pl.CostEstimate(
        flops=2 * B * (D_in * H + H * D_out) + 4 * B * (H + D_out),
        transcendentals=B,  # one rsqrt per row
        bytes_accessed=(B * D_in * x_itemsize
                        + B * D_out * out_itemsize
                        + (D_in * H + H * D_out) * jnp.dtype(w_dtype).itemsize
                        + (H + D_out) * 4),
    )

    return pl.pallas_call(
        _projection_head_kernel,
        out_shape=jax.ShapeDtypeStruct((B, D_out), out_dtype),
        grid_spec=pltpu.PrefetchScalarGridSpec(
            num_scalar_prefetch=0,
            grid=grid,
            in_specs=[
                pl.BlockSpec((tile_b, D_in), lambda i: (i, 0)),   # x tile (streamed)
                pl.BlockSpec((D_in, H), lambda i: (0, 0)),        # W1 (resident)
                pl.BlockSpec((1, H), lambda i: (0, 0)),           # b1 (resident, f32)
                pl.BlockSpec((H, D_out), lambda i: (0, 0)),       # W2 (resident)
                pl.BlockSpec((1, D_out), lambda i: (0, 0)),       # b2 (resident, f32)
            ],
            out_specs=pl.BlockSpec((tile_b, D_out), lambda i: (i, 0)),  # lane-dense 128
        ),
        compiler_params=pltpu.CompilerParams(
            dimension_semantics=("parallel",),   # multi-step grid shards across v7x cores
            vmem_limit_bytes=vmem_limit,
        ),
        cost_estimate=cost,
    )(x, w1_k, b1_2d, w2_k, b2_2d)


def projection_head_ref(x, w1, b1, w2, b2):
    h = jnp.maximum(x @ w1 + b1, 0.0)
    y = jnp.maximum(h @ w2 + b2, 0.0)
    norm = jnp.sqrt(jnp.sum(y * y, axis=-1, keepdims=True))
    return y / jnp.maximum(norm, 1e-12)


if __name__ == "__main__":
    # Small shapes consistent with the module: input_dim=32, hidden=256, output_dim=128
    B, D_in, H, D_out = 8, 32, 256, 128

    key = jax.random.PRNGKey(0)
    kx, kw1, kb1, kw2, kb2 = jax.random.split(key, 5)

    x = jax.random.normal(kx, (B, D_in), dtype=jnp.float32)
    # Synthetic params (shapes match nn.Linear(D_in,256) / nn.Linear(256,D_out)),
    # stored pre-transposed as (in, out).
    w1 = jax.random.normal(kw1, (D_in, H), dtype=jnp.float32) * 0.05
    b1 = jax.random.normal(kb1, (H,), dtype=jnp.float32) * 0.05
    w2 = jax.random.normal(kw2, (H, D_out), dtype=jnp.float32) * 0.05
    b2 = jax.random.normal(kb2, (D_out,), dtype=jnp.float32) * 0.05

    ref = projection_head_ref(x, w1, b1, w2, b2)

    # 1) f32 data path: exact semantics of the torch module.
    out_f32 = jax.block_until_ready(projection_head(x, w1, b1, w2, b2, use_bf16=False))
    assert out_f32.shape == (B, D_out)
    assert jnp.allclose(out_f32, ref, atol=1e-5, rtol=1e-5), "f32 path mismatch vs reference"

    # 2) bf16 MXU data path (default): f32 accumulation, looser tolerance.
    out_bf16 = jax.block_until_ready(projection_head(x, w1, b1, w2, b2, use_bf16=True))
    assert out_bf16.shape == (B, D_out)
    assert jnp.allclose(out_bf16, ref, atol=3e-2, rtol=3e-2), "bf16 path mismatch vs reference"

    # 3) bf16 output stream (halves the dominant HBM write).
    out_bf16_o = jax.block_until_ready(
        projection_head(x, w1, b1, w2, b2, use_bf16=True, out_dtype=jnp.bfloat16))
    assert out_bf16_o.dtype == jnp.bfloat16
    assert jnp.allclose(out_bf16_o.astype(jnp.float32), ref, atol=3e-2, rtol=3e-2), \
        "bf16-output path mismatch vs reference"

    # 4) Ragged batch with a partial last block (B not a multiple of tile_b)
    #    exercises the mask-on-store path (no wrapper-side padding).
    B2 = 20
    x2 = jax.random.normal(jax.random.PRNGKey(1), (B2, D_in), dtype=jnp.float32)
    ref2 = projection_head_ref(x2, w1, b1, w2, b2)
    out2 = jax.block_until_ready(
        projection_head(x2, w1, b1, w2, b2, tile_b=16, use_bf16=False))
    assert out2.shape == (B2, D_out)
    assert jnp.allclose(out2, ref2, atol=1e-5, rtol=1e-5), "ragged/masked path mismatch"

    # 5) Larger ragged batch: auto tile_b policy -> multi-step grid (pipelined,
    #    both v7x cores busy), partial last block.
    B3 = 1000
    x3 = jax.random.normal(jax.random.PRNGKey(2), (B3, D_in), dtype=jnp.float32)
    ref3 = projection_head_ref(x3, w1, b1, w2, b2)
    out3 = jax.block_until_ready(projection_head(x3, w1, b1, w2, b2, use_bf16=True))
    assert out3.shape == (B3, D_out)
    assert jnp.allclose(out3, ref3, atol=3e-2, rtol=3e-2), "multi-step grid mismatch"

    print("KERNEL_OK")
</pallas_src>

<mosaic_0001>
module attributes {stable_mosaic.version = 11 : i64} {
  func.func @_projection_head_kernel(%arg0: i32, %arg1: memref<8x32xf32, #tpu.memory_space<vmem>>, %arg2: memref<32x256xf32, #tpu.memory_space<vmem>>, %arg3: memref<1x256xf32, #tpu.memory_space<vmem>>, %arg4: memref<256x128xf32, #tpu.memory_space<vmem>>, %arg5: memref<1x128xf32, #tpu.memory_space<vmem>>, %arg6: memref<8x128xf32, #tpu.memory_space<vmem>>) attributes {dimension_semantics = [#tpu.dimension_semantics<parallel>], iteration_bounds = array<i64: 1>, scalar_prefetch = 0 : i64, scratch_operands = 0 : i64, tpu.core_type = #tpu.core_type<tc>, window_params = [{transform_indices = @transform_0, window_bounds = array<i64: 8, 32>}, {pipeline_mode = #tpu.pipeline_mode<synchronous>, transform_indices = @transform_1, window_bounds = array<i64: 32, 256>}, {pipeline_mode = #tpu.pipeline_mode<synchronous>, transform_indices = @transform_2, window_bounds = array<i64: 1, 256>}, {pipeline_mode = #tpu.pipeline_mode<synchronous>, transform_indices = @transform_3, window_bounds = array<i64: 256, 128>}, {pipeline_mode = #tpu.pipeline_mode<synchronous>, transform_indices = @transform_4, window_bounds = array<i64: 1, 128>}, {transform_indices = @transform_5, window_bounds = array<i64: 8, 128>}]} {
    %c0 = arith.constant 0 : index
    %c0_0 = arith.constant 0 : index
    %0 = vector.load %arg1[%c0, %c0_0] : memref<8x32xf32, #tpu.memory_space<vmem>>, vector<8x32xf32>
    %c0_1 = arith.constant 0 : index
    %c0_2 = arith.constant 0 : index
    %1 = vector.load %arg2[%c0_1, %c0_2] : memref<32x256xf32, #tpu.memory_space<vmem>>, vector<32x256xf32>
    %cst = arith.constant dense<0.000000e+00> : vector<8x256xf32>
    %2 = tpu.matmul %0, %1, %cst {dimension_numbers = #tpu.dot_dimension_numbers<[1], [0], [0], [1], [0, 0, 1, 1], [], []>} : vector<8x32xf32>, vector<32x256xf32>, vector<8x256xf32> -> vector<8x256xf32>
    %c0_3 = arith.constant 0 : index
    %c0_4 = arith.constant 0 : index
    %3 = vector.load %arg3[%c0_3, %c0_4] : memref<1x256xf32, #tpu.memory_space<vmem>>, vector<1x256xf32>
    %4 = vector.broadcast %3 : vector<1x256xf32> to vector<8x256xf32>
    %5 = arith.addf %2, %4 : vector<8x256xf32>
    %cst_5 = arith.constant 0.000000e+00 : f32
    %6 = vector.broadcast %cst_5 : f32 to vector<8x256xf32>
    %7 = arith.maximumf %5, %6 : vector<8x256xf32>
    %c0_6 = arith.constant 0 : index
    %c0_7 = arith.constant 0 : index
    %8 = vector.load %arg4[%c0_6, %c0_7] : memref<256x128xf32, #tpu.memory_space<vmem>>, vector<256x128xf32>
    %cst_8 = arith.constant dense<0.000000e+00> : vector<8x128xf32>
    %9 = tpu.matmul %7, %8, %cst_8 {dimension_numbers = #tpu.dot_dimension_numbers<[1], [0], [0], [1], [0, 0, 1, 1], [], []>} : vector<8x256xf32>, vector<256x128xf32>, vector<8x128xf32> -> vector<8x128xf32>
    %c0_9 = arith.constant 0 : index
    %c0_10 = arith.constant 0 : index
    %10 = vector.load %arg5[%c0_9, %c0_10] : memref<1x128xf32, #tpu.memory_space<vmem>>, vector<1x128xf32>
    %11 = vector.broadcast %10 : vector<1x128xf32> to vector<8x128xf32>
    %12 = arith.addf %9, %11 : vector<8x128xf32>
    %cst_11 = arith.constant 0.000000e+00 : f32
    %13 = vector.broadcast %cst_11 : f32 to vector<8x128xf32>
    %14 = arith.maximumf %12, %13 : vector<8x128xf32>
    %15 = arith.mulf %14, %14 : vector<8x128xf32>
    %cst_12 = arith.constant dense<0.000000e+00> : vector<8xf32>
    %16 = vector.multi_reduction <add>, %15, %cst_12 [1] : vector<8x128xf32> to vector<8xf32>
    %17 = vector.shape_cast %16 : vector<8xf32> to vector<8x1xf32>
    %cst_13 = arith.constant 1.000000e-24 : f32
    %18 = vector.broadcast %cst_13 : f32 to vector<8x1xf32>
    %19 = arith.maximumf %17, %18 : vector<8x1xf32>
    %20 = math.rsqrt %19 : vector<8x1xf32>
    %21 = vector.broadcast %20 : vector<8x1xf32> to vector<8x128xf32>
    %22 = arith.mulf %14, %21 : vector<8x128xf32>
    %c0_14 = arith.constant 0 : index
    %c0_15 = arith.constant 0 : index
    %23 = vector.load %arg6[%c0_14, %c0_15] : memref<8x128xf32, #tpu.memory_space<vmem>>, vector<8x128xf32>
    tpu.vector_store %arg6[%c0_14, %c0_15], %22 {strides = array<i32>} : memref<8x128xf32, #tpu.memory_space<vmem>>, vector<8x128xf32>,
    return
  }
  func.func @transform_0(%arg0: i32) -> (i32, i32) {
    %c0_i32 = arith.constant 0 : i32
    %c0_i32_0 = arith.constant 0 : i32
    return %arg0, %c0_i32 : i32, i32
  }
  func.func @transform_1(%arg0: i32) -> (i32, i32) {
    %c0_i32 = arith.constant 0 : i32
    %c0_i32_0 = arith.constant 0 : i32
    %c0_i32_1 = arith.constant 0 : i32
    return %c0_i32, %c0_i32_0 : i32, i32
  }
  func.func @transform_2(%arg0: i32) -> (i32, i32) {
    %c0_i32 = arith.constant 0 : i32
    %c0_i32_0 = arith.constant 0 : i32
    %c0_i32_1 = arith.constant 0 : i32
    return %c0_i32, %c0_i32_0 : i32, i32
  }
  func.func @transform_3(%arg0: i32) -> (i32, i32) {
    %c0_i32 = arith.constant 0 : i32
    %c0_i32_0 = arith.constant 0 : i32
    %c0_i32_1 = arith.constant 0 : i32
    return %c0_i32, %c0_i32_0 : i32, i32
  }
  func.func @transform_4(%arg0: i32) -> (i32, i32) {
    %c0_i32 = arith.constant 0 : i32
    %c0_i32_0 = arith.constant 0 : i32
    %c0_i32_1 = arith.constant 0 : i32
    return %c0_i32, %c0_i32_0 : i32, i32
  }
  func.func @transform_5(%arg0: i32) -> (i32, i32) {
    %c0_i32 = arith.constant 0 : i32
    %c0_i32_0 = arith.constant 0 : i32
    return %arg0, %c0_i32 : i32, i32
  }
}

</mosaic_0001>

<llo_original>
// kernel: tpu_custom_call.1
$region0: #{tpu_custom_call.1}
  #allocation0 [shape = 'u32[]', space=smem, size = 0x4, offset = 0x4, fixed_abs, tag = 'smem constant byte address 0x4 - core index']
  #allocation1 [shape = 'u32[144,128]{1,0:T(1,128)}', space=vmem, size = 0x12000, scoped, tag = 'internal scratch']
  %s0 = inlined_call_operand.hbm [shape: f32[8,32], index: 0, kind: input, shape index: {}]
  %s1 = inlined_call_operand.hbm [shape: f32[32,256], index: 1, kind: input, shape index: {}]
  %s2 = inlined_call_operand.vmem [shape: f32[1,256], index: 2, kind: input, shape index: {}]
  %s3 = inlined_call_operand.hbm [shape: f32[256,128], index: 3, kind: input, shape index: {}]
  %s4 = inlined_call_operand.vmem [shape: f32[1,128], index: 4, kind: input, shape index: {}]
  %s5 = inlined_call_operand.hbm [shape: f32[8,128], index: 5, kind: output, shape index: {}]
  %s6 = sld [smem:[#allocation0]]
  $region42: #{tpu_custom_call.1} parent=0
    _
  %s8 = ssub.s32 1, %s6
  %s9 = scalar_select 0, %s8, %s6
  $region1: #{tpu_custom_call.1} parent=0
    #allocation2 [shape = 'u8[4096]{0}', space=vmem, size = 0x1000, scoped, tag = 'input window, operand 0, single buffered']
    #allocation3 [shape = 's32[1]{0}', space=sflag, size = 0x4, scoped, tag = 'scoped memory for tpu_custom_call.1']
    #allocation4 [shape = 's32[1]{0}', space=sflag, size = 0x4, scoped, tag = 'scoped memory for tpu_custom_call.1']
    #allocation5 [shape = 'u8[32768]{0}', space=vmem, size = 0x8000, scoped, tag = 'input window, operand 1, single buffered']
    #allocation6 [shape = 's32[1]{0}', space=sflag, size = 0x4, scoped, tag = 'scoped memory for tpu_custom_call.1']
    #allocation7 [shape = 'u8[131072]{0}', space=vmem, size = 0x20000, scoped, tag = 'input window, operand 3, single buffered']
    #allocation8 [shape = 'u8[4096]{0}', space=vmem, size = 0x1000, scoped, tag = 'output window, operand 0, single buffered']
    %10 = vsyncpa [#allocation3], 0
    %11 = vsyncpa [#allocation6], 0
    %12 = vsyncpa [#allocation4], 0
    // Predicated region
    $region2: #{tpu_custom_call.1} parent=1 // pred_check
      _
    $region3: #{tpu_custom_call.1} parent=1 // pred_check_branch
      %14 = sbr.rel (0) target = $region5
    $region4: #{tpu_custom_call.1} parent=1 // pred_region
      %s16 = ssub.s32 128, 128
      %17 = vsyncadd [#allocation3], %s16
      %s19 = sshll.u32 [#allocation2], 4
      %s20 = int_to_ptr.vmem [resolvable:$true] %s19
      %22 = dma.hbm_to_vmem [thread:$0]  %s0, 128, %s20, [#allocation3]
    $region5: #{tpu_custom_call.1} parent=1 // pred_fallthru
      _
    // Predicated region
    $region6: #{tpu_custom_call.1} parent=1 // pred_check
      _
    $region7: #{tpu_custom_call.1} parent=1 // pred_check_branch
      %24 = sbr.rel (0) target = $region9
    $region8: #{tpu_custom_call.1} parent=1 // pred_region
      %s26 = ssub.s32 1024, 1024
      %27 = vsyncadd [#allocation6], %s26
      %s28 = sshll.u32 [#allocation5], 4
      %s29 = int_to_ptr.vmem [resolvable:$true] %s28
      %34 = dma.hbm_to_vmem [thread:$0]  %s1, 1024, %s29, [#allocation6], 256, 256, 16
    $region9: #{tpu_custom_call.1} parent=1 // pred_fallthru
      _
    // Predicated region
    $region10: #{tpu_custom_call.1} parent=1 // pred_check
      _
    $region11: #{tpu_custom_call.1} parent=1 // pred_check_branch
      %36 = sbr.rel (0) target = $region13
    $region12: #{tpu_custom_call.1} parent=1 // pred_region
      _
    $region13: #{tpu_custom_call.1} parent=1 // pred_fallthru
      _
    // Predicated region
    $region14: #{tpu_custom_call.1} parent=1 // pred_check
      _
    $region15: #{tpu_custom_call.1} parent=1 // pred_check_branch
      %38 = sbr.rel (0) target = $region17
    $region16: #{tpu_custom_call.1} parent=1 // pred_region
      %s40 = ssub.s32 4096, 4096
      %41 = vsyncadd [#allocation6], %s40
      %s42 = sshll.u32 [#allocation7], 4
      %s43 = int_to_ptr.vmem [resolvable:$true] %s42
      %48 = dma.hbm_to_vmem [thread:$0]  %s3, 4096, %s43, [#allocation6], 128, 128, 8
    $region17: #{tpu_custom_call.1} parent=1 // pred_fallthru
      _
    // Predicated region
    $region18: #{tpu_custom_call.1} parent=1 // pred_check
      _
    $region19: #{tpu_custom_call.1} parent=1 // pred_check_branch
      %50 = sbr.rel (0) target = $region21
    $region20: #{tpu_custom_call.1} parent=1 // pred_region
      _
    $region21: #{tpu_custom_call.1} parent=1 // pred_fallthru
      _
    // Predicated region
    $region22: #{tpu_custom_call.1} parent=1 // pred_check
      _
    $region23: #{tpu_custom_call.1} parent=1 // pred_check_branch
      %52 = sbr.rel (0) target = $region25
    $region24: #{tpu_custom_call.1} parent=1 // pred_region
      %53 = dma.done [#allocation3], 128
    $region25: #{tpu_custom_call.1} parent=1 // pred_fallthru
      _
    // Predicated region
    $region26: #{tpu_custom_call.1} parent=1 // pred_check
      _
    $region27: #{tpu_custom_call.1} parent=1 // pred_check_branch
      %55 = sbr.rel (0) target = $region29
    $region28: #{tpu_custom_call.1} parent=1 // pred_region
      %56 = dma.done [#allocation6], 1024
    $region29: #{tpu_custom_call.1} parent=1 // pred_fallthru
      _
    // Predicated region
    $region30: #{tpu_custom_call.1} parent=1 // pred_check
      _
    $region31: #{tpu_custom_call.1} parent=1 // pred_check_branch
      %58 = sbr.rel (0) target = $region33
    $region32: #{tpu_custom_call.1} parent=1 // pred_region
      %59 = dma.done [#allocation6], 4096
    $region33: #{tpu_custom_call.1} parent=1 // pred_fallthru
      _
    %v60 = vld [vmem:[#allocation2] sm:$0xff]
    %v61 = vld [vmem:[#allocation5] sm:$0xff]
    %v62 = vld [vmem:[#allocation5 + $0x8] sm:$0xff]
    %v63 = vld [vmem:[#allocation5 + $0x10] sm:$0xff]
    %v64 = vld [vmem:[#allocation5 + $0x18] sm:$0xff]
    %v65 = vld [vmem:[#allocation5 + $0x20] sm:$0xff]
    %v66 = vld [vmem:[#allocation5 + $0x28] sm:$0xff]
    %v67 = vld [vmem:[#allocation5 + $0x30] sm:$0xff]
    %v68 = vld [vmem:[#allocation5 + $0x38] sm:$0xff]
    %v69 = vld [vmem:[%s2] sm:$0x3]
    %v71 = vlaneseq
    %v72 = vshrl.u32 %v71, 7
    %v73 = vsub.s32 0, %v72
    %v74 = vrot.slane %v69, %v73
    %v75 = vlaneseq
    %v76 = vshrl.u32 %v75, 7
    %v77 = vsub.s32 1, %v76
    %v78 = vrot.slane %v69, %v77
    %vm81 = vcmask 261120
    %v83 = vsel %vm81, %v60, 0
    %85 = vmatprep.subr.mxu0 %v62
    %86 = vmatpush1.msra.mxu0 %v61
    %87 = vmatprep.subr.mxu0 %v64
    %88 = vmatpush1.msra.mxu0 %v63
    %89 = vmatprep.subr.mxu0 %v66
    %90 = vmatpush1.msra.mxu0 %v65
    %91 = vmatprep.subr.mxu0 %v68
    %92 = vmatpush1.msra.mxu0 %v67
    %93 = vmatprep.subr.mxu0 0.0
    %94 = vmatpush1.msra.mxu0 0.0
    %95 = vmatprep.subr.mxu0 0.0
    %96 = vmatpush1.msra.mxu0 0.0
    %97 = vmatprep.subr.mxu0 0.0
    %98 = vmatpush1.msra.mxu0 0.0
    %99 = vmatprep.subr.mxu0 0.0
    %100 = vmatpush1.msra.mxu0 0.0
    %101 = vmatprep.subr.mxu0 0.0
    %102 = vmatpush1.msra.mxu0 0.0
    %103 = vmatprep.subr.mxu0 0.0
    %104 = vmatpush1.msra.mxu0 0.0
    %105 = vmatprep.subr.mxu0 0.0
    %106 = vmatpush1.msra.mxu0 0.0
    %107 = vmatprep.subr.mxu0 0.0
    %108 = vmatpush1.msra.mxu0 0.0
    %109 = vmatprep.subr.mxu0 0.0
    %110 = vmatpush1.msra.mxu0 0.0
    %111 = vmatprep.subr.mxu0 0.0
    %112 = vmatpush1.msra.mxu0 0.0
    %113 = vmatprep.subr.mxu0 0.0
    %114 = vmatpush1.msra.mxu0 0.0
    %115 = vmatprep.subr.mxu0 0.0
    %116 = vmatpush1.msra.mxu0 0.0
    %117 = vmatprep.subr.mxu0 0.0
    %118 = vmatpush1.msra.mxu0 0.0
    %119 = vmatprep.subr.mxu0 0.0
    %120 = vmatpush1.msra.mxu0 0.0
    %121 = vmatprep.subr.mxu0 0.0
    %122 = vmatpush1.msra.mxu0 0.0
    %123 = vmatprep.subr.mxu0 0.0
    %124 = vmatpush1.msra.mxu0 0.0
    %125 = vmatprep.subr.mxu0 0.0
    %126 = vmatpush1.msra.mxu0 0.0
    %127 = vmatprep.subr.mxu0 0.0
    %128 = vmatpush1.msra.mxu0 0.0
    %129 = vmatprep.subr.mxu0 0.0
    %130 = vmatpush1.msra.mxu0 0.0
    %131 = vmatprep.subr.mxu0 0.0
    %132 = vmatpush1.msra.mxu0 0.0
    %133 = vmatprep.subr.mxu0 0.0
    %134 = vmatpush1.msra.mxu0 0.0
    %135 = vmatprep.subr.mxu0 0.0
    %136 = vmatpush1.msra.mxu0 0.0
    %137 = vmatprep.subr.mxu0 0.0
    %138 = vmatpush1.msra.mxu0 0.0
    %139 = vmatprep.subr.mxu0 0.0
    %140 = vmatpush1.msra.mxu0 0.0
    %141 = vmatprep.subr.mxu0 0.0
    %142 = vmatpush1.msra.mxu0 0.0
    %143 = vmatprep.subr.mxu0 0.0
    %144 = vmatpush1.msra.mxu0 0.0
    %145 = vmatprep.subr.mxu0 0.0
    %146 = vmatpush1.msra.mxu0 0.0
    %147 = vmatprep.subr.mxu0 0.0
    %148 = vmatpush1.msra.mxu0 0.0
    %149 = vmatprep.mubr.f32.mxu0 0.0
    %150 = vmatmul.mubr.f32.gmra.mrb[0].mxu0 %v83
    %v151 = vpop.f32.mrb[0].mxu0
    %v152 = vadd.f32 %v74, %v151
    %v153 = vpop.f32.mrb[0].mxu0
    %v154 = vadd.f32 %v78, %v153
    %155 = vdwg.mxu0
    %v156 = vmax.f32 %v152, 0.0
    %v157 = vmax.f32 %v154, 0.0
    %v158 = vld [vmem:[#allocation7] sm:$0xff]
    %v159 = vld [vmem:[#allocation7 + $0x8] sm:$0xff]
    %v160 = vld [vmem:[#allocation7 + $0x10] sm:$0xff]
    %v161 = vld [vmem:[#allocation7 + $0x18] sm:$0xff]
    %v162 = vld [vmem:[#allocation7 + $0x20] sm:$0xff]
    %v163 = vld [vmem:[#allocation7 + $0x28] sm:$0xff]
    %v164 = vld [vmem:[#allocation7 + $0x30] sm:$0xff]
    %v165 = vld [vmem:[#allocation7 + $0x38] sm:$0xff]
    %v166 = vld [vmem:[#allocation7 + $0x40] sm:$0xff]
    %v167 = vld [vmem:[#allocation7 + $0x48] sm:$0xff]
    %v168 = vld [vmem:[#allocation7 + $0x50] sm:$0xff]
    %v169 = vld [vmem:[#allocation7 + $0x58] sm:$0xff]
    %v170 = vld [vmem:[#allocation7 + $0x60] sm:$0xff]
    %v171 = vld [vmem:[#allocation7 + $0x68] sm:$0xff]
    %v172 = vld [vmem:[#allocation7 + $0x70] sm:$0xff]
    %v173 = vld [vmem:[#allocation7 + $0x78] sm:$0xff]
    %v174 = vld [vmem:[#allocation7 + $0x80] sm:$0xff]
    %v175 = vld [vmem:[#allocation7 + $0x88] sm:$0xff]
    %v176 = vld [vmem:[#allocation7 + $0x90] sm:$0xff]
    %v177 = vld [vmem:[#allocation7 + $0x98] sm:$0xff]
    %v178 = vld [vmem:[#allocation7 + $0xa0] sm:$0xff]
    %v179 = vld [vmem:[#allocation7 + $0xa8] sm:$0xff]
    %v180 = vld [vmem:[#allocation7 + $0xb0] sm:$0xff]
    %v181 = vld [vmem:[#allocation7 + $0xb8] sm:$0xff]
    %v182 = vld [vmem:[#allocation7 + $0xc0] sm:$0xff]
    %v183 = vld [vmem:[#allocation7 + $0xc8] sm:$0xff]
    %v184 = vld [vmem:[#allocation7 + $0xd0] sm:$0xff]
    %v185 = vld [vmem:[#allocation7 + $0xd8] sm:$0xff]
    %v186 = vld [vmem:[#allocation7 + $0xe0] sm:$0xff]
    %v187 = vld [vmem:[#allocation7 + $0xe8] sm:$0xff]
    %v188 = vld [vmem:[#allocation7 + $0xf0] sm:$0xff]
    %v189 = vld [vmem:[#allocation7 + $0xf8] sm:$0xff]
    %v190 = vld [vmem:[%s4] sm:$0x1]
    %v192 = vlaneseq
    %v193 = vshrl.u32 %v192, 7
    %v194 = vsub.s32 0, %v193
    %v195 = vrot.slane %v190, %v194
    %197 = vmatprep.subr.mxu0 0.0
    %198 = vmatpush1.msra.mxu0 %v158
    %199 = vmatprep.subr.mxu0 0.0
    %200 = vmatpush1.msra.mxu0 %v159
    %201 = vmatprep.subr.mxu0 0.0
    %202 = vmatpush1.msra.mxu0 %v160
    %203 = vmatprep.subr.mxu0 0.0
    %204 = vmatpush1.msra.mxu0 %v161
    %205 = vmatprep.subr.mxu0 0.0
    %206 = vmatpush1.msra.mxu0 %v162
    %207 = vmatprep.subr.mxu0 0.0
    %208 = vmatpush1.msra.mxu0 %v163
    %209 = vmatprep.subr.mxu0 0.0
    %210 = vmatpush1.msra.mxu0 %v164
    %211 = vmatprep.subr.mxu0 0.0
    %212 = vmatpush1.msra.mxu0 %v165
    %213 = vmatprep.subr.mxu0 0.0
    %214 = vmatpush1.msra.mxu0 %v166
    %215 = vmatprep.subr.mxu0 0.0
    %216 = vmatpush1.msra.mxu0 %v167
    %217 = vmatprep.subr.mxu0 0.0
    %218 = vmatpush1.msra.mxu0 %v168
    %219 = vmatprep.subr.mxu0 0.0
    %220 = vmatpush1.msra.mxu0 %v169
    %221 = vmatprep.subr.mxu0 0.0
    %222 = vmatpush1.msra.mxu0 %v170
    %223 = vmatprep.subr.mxu0 0.0
    %224 = vmatpush1.msra.mxu0 %v171
    %225 = vmatprep.subr.mxu0 0.0
    %226 = vmatpush1.msra.mxu0 %v172
    %227 = vmatprep.subr.mxu0 0.0
    %228 = vmatpush1.msra.mxu0 %v173
    %229 = vmatprep.subr.mxu0 0.0
    %230 = vmatpush1.msra.mxu0 %v174
    %231 = vmatprep.subr.mxu0 0.0
    %232 = vmatpush1.msra.mxu0 %v175
    %233 = vmatprep.subr.mxu0 0.0
    %234 = vmatpush1.msra.mxu0 %v176
    %235 = vmatprep.subr.mxu0 0.0
    %236 = vmatpush1.msra.mxu0 %v177
    %237 = vmatprep.subr.mxu0 0.0
    %238 = vmatpush1.msra.mxu0 %v178
    %239 = vmatprep.subr.mxu0 0.0
    %240 = vmatpush1.msra.mxu0 %v179
    %241 = vmatprep.subr.mxu0 0.0
    %242 = vmatpush1.msra.mxu0 %v180
    %243 = vmatprep.subr.mxu0 0.0
    %244 = vmatpush1.msra.mxu0 %v181
    %245 = vmatprep.subr.mxu0 0.0
    %246 = vmatpush1.msra.mxu0 %v182
    %247 = vmatprep.subr.mxu0 0.0
    %248 = vmatpush1.msra.mxu0 %v183
    %249 = vmatprep.subr.mxu0 0.0
    %250 = vmatpush1.msra.mxu0 %v184
    %251 = vmatprep.subr.mxu0 0.0
    %252 = vmatpush1.msra.mxu0 %v185
    %253 = vmatprep.subr.mxu0 0.0
    %254 = vmatpush1.msra.mxu0 %v186
    %255 = vmatprep.subr.mxu0 0.0
    %256 = vmatpush1.msra.mxu0 %v187
    %257 = vmatprep.subr.mxu0 0.0
    %258 = vmatpush1.msra.mxu0 %v188
    %259 = vmatprep.subr.mxu0 0.0
    %260 = vmatpush1.msra.mxu0 %v189
    %261 = vmatprep.mubr.f32.mxu0 %v157
    %262 = vmatmul.mubr.f32.gmra.mrb[0].mxu0 %v156
    %v263 = vpop.f32.mrb[0].mxu0
    %v264 = vadd.f32 %v195, %v263
    %v265 = vpop.f32.mrb[0].mxu0
    %266 = vdwg.mxu0
    %v267 = vmax.f32 %v264, 0.0
    %v268 = vmul.f32 %v267, %v267
    %269 = vadd.xlane.f32.xlu0 %v268
    %v270 = vpop.xlane.xlu0 %269
    %v271 = vmax.f32 %v270, 1e-24
    %v272 = vrsqrt.pop %v271
    %v273 = vmul.f32 %v267, %v272
    %274 = vst [vmem:[#allocation8] sm:$0xff] %v273
    // Predicated region
    $region34: #{tpu_custom_call.1} parent=1 // pred_check
      _
    $region35: #{tpu_custom_call.1} parent=1 // pred_check_branch
      %276 = sbr.rel (0) target = $region37
    $region36: #{tpu_custom_call.1} parent=1 // pred_region
      %s278 = ssub.s32 128, 128
      %279 = vsyncadd [#allocation4], %s278
      %s281 = sshll.u32 [#allocation8], 4
      %s282 = int_to_ptr.vmem [resolvable:$true] %s281
      %284 = dma.vmem_to_hbm [thread:$0]  %s282, 128, %s5, [#allocation4]
    $region37: #{tpu_custom_call.1} parent=1 // pred_fallthru
      _
    // Predicated region
    $region38: #{tpu_custom_call.1} parent=1 // pred_check
      _
    $region39: #{tpu_custom_call.1} parent=1 // pred_check_branch
      %286 = sbr.rel (0) target = $region41
    $region40: #{tpu_custom_call.1} parent=1 // pred_region
      %287 = dma.done [#allocation4], 128
    $region41: #{tpu_custom_call.1} parent=1 // pred_fallthru
      _
    %288 = vsyncpa [#allocation3], 1
    %289 = vsyncpa [#allocation6], 1
    %290 = vsyncpa [#allocation4], 1

</llo_original>
